<compile_context>
chip_gen: v7x
topology: tpu7x:2x2x1
jax: 0.10.0
libtpu: 0.0.40
codegen_flags: <defaults>
</compile_context>

<pallas_src>
import jax
import jax.numpy as jnp
from jax.experimental import pallas as pl
from jax.experimental.pallas import tpu as pltpu


def _round_up(x, m):
    return ((x + m - 1) // m) * m


# ---------------------------------------------------------------------------
# Pallas kernel: one (batch n, spatial M-tile) of
#     out[n, :, m-tile] = W(Cp, Kp) @ patches[n, :, m-tile]  + bias
# ---------------------------------------------------------------------------
def _conv_gemm_kernel(p_ref, w_ref, b_ref, o_ref):
    # p_ref: (1, Kp, tm) bf16   w_ref: (Cp, Kp) bf16   b_ref: (Cp, 1) f32
    # o_ref: (1, Cp, tm) f32
    acc = jnp.dot(w_ref[...], p_ref[0], preferred_element_type=jnp.float32)
    o_ref[0] = acc + b_ref[...]


def _conv_gemm(patches, weight_ck, bias_col, *, tm, vmem_limit):
    N, Kp, Mp = patches.shape
    Cp = weight_ck.shape[0]
    assert Mp % tm == 0 and tm % 128 == 0 and Kp % 8 == 0 and Cp % 8 == 0

    return pl.pallas_call(
        _conv_gemm_kernel,
        out_shape=jax.ShapeDtypeStruct((N, Cp, Mp), jnp.float32),
        grid_spec=pltpu.PrefetchScalarGridSpec(
            num_scalar_prefetch=0,
            grid=(N, Mp // tm),
            in_specs=[
                pl.BlockSpec((1, Kp, tm), lambda n, m: (n, 0, m)),   # patches tile (bf16)
                pl.BlockSpec((Cp, Kp), lambda n, m: (0, 0)),         # resident weight (bf16)
                pl.BlockSpec((Cp, 1), lambda n, m: (0, 0)),          # bias column (f32)
            ],
            out_specs=pl.BlockSpec((1, Cp, tm), lambda n, m: (n, 0, m)),  # lane-dense spatial
        ),
        compiler_params=pltpu.CompilerParams(
            dimension_semantics=("parallel", "parallel"),
            vmem_limit_bytes=vmem_limit,
        ),
    )(patches, weight_ck, bias_col)


# ---------------------------------------------------------------------------
# DownSample forward: Conv3d(dims, dim, kernel_size=3, stride=2, padding=1)
# ---------------------------------------------------------------------------
def downsample_forward(x, weight, bias, *, tm=2048):
    """
    x      : (N, Cin, D, H, W) float32
    weight : (Cout, Cin, 3, 3, 3)
    bias   : (Cout,)
    returns: (N, Cout, Do, Ho, Wo) float32, Do = (D + 2 - 3)//2 + 1, etc.
    """
    N, Cin, D, H, W = x.shape
    Cout = weight.shape[0]
    Do = (D - 1) // 2 + 1
    Ho = (H - 1) // 2 + 1
    Wo = (W - 1) // 2 + 1
    M_sp = Do * Ho * Wo
    K = Cin * 27

    # ---- im2col in bf16, channels-first (taps/channels on a non-minor axis) ----
    xb = x.astype(jnp.bfloat16)
    xp = jnp.pad(xb, ((0, 0), (0, 0), (1, 1), (1, 1), (1, 1)))
    slabs = []
    for kd in range(3):
        for kh in range(3):
            for kw in range(3):
                slabs.append(
                    xp[:, :,
                       kd:kd + 2 * Do - 1:2,
                       kh:kh + 2 * Ho - 1:2,
                       kw:kw + 2 * Wo - 1:2]
                )
    # (N, 27*Cin, Do, Ho, Wo) -> (N, K, M_spatial); K order = tap-major, Cin-minor
    patches = jnp.concatenate(slabs, axis=1).reshape(N, K, M_sp)

    # torch weight (Cout, Cin, kd, kh, kw) -> (Cout, kd, kh, kw, Cin) -> (Cout, K)
    weight_ck = jnp.transpose(weight, (0, 2, 3, 4, 1)).reshape(Cout, K)

    # sublane-quantum padding only (no 128-wide Cout inflation)
    Kp = _round_up(K, 8)
    Cp = _round_up(Cout, 8)

    # ---- M tile selection: big tiles, >=2 M-steps when possible, v7x VMEM budget ----
    Msp128 = _round_up(M_sp, 128)
    tm_eff = min(_round_up(tm, 128), Msp128)
    while tm_eff > 128 and Msp128 // tm_eff < 2:
        tm_eff = _round_up(tm_eff // 2, 128)

    def _vmem_bytes(t):
        return (2 * Kp * t * 2          # double-buffered bf16 patch tile
                + 2 * Cp * t * 4        # double-buffered f32 output tile
                + 2 * Cp * Kp * 2       # weight buffers (resident)
                + 2 * Cp * 4)           # bias buffers

    while tm_eff > 128 and _vmem_bytes(tm_eff) > (44 << 20):   # fits v7x's 64 MiB
        tm_eff = _round_up(tm_eff // 2, 128)
    vmem_limit = int(min(max(_vmem_bytes(tm_eff) + (8 << 20), 32 << 20), 56 << 20))

    Mp = _round_up(M_sp, tm_eff)

    patches = jnp.pad(patches, ((0, 0), (0, Kp - K), (0, Mp - M_sp)))
    weight_ck = jnp.pad(weight_ck, ((0, Cp - Cout), (0, Kp - K))).astype(jnp.bfloat16)
    bias_col = jnp.pad(bias.astype(jnp.float32).reshape(Cout, 1), ((0, Cp - Cout), (0, 0)))

    out3d = _conv_gemm(patches, weight_ck, bias_col, tm=tm_eff, vmem_limit=vmem_limit)

    # already in NCDHW order: just drop padding and reshape (no transpose pass)
    return out3d[:, :Cout, :M_sp].reshape(N, Cout, Do, Ho, Wo)


def _reference(x, weight, bias):
    Cout = weight.shape[0]
    out = jax.lax.conv_general_dilated(
        x, weight, window_strides=(2, 2, 2),
        padding=((1, 1), (1, 1), (1, 1)),
        dimension_numbers=("NCDHW", "OIDHW", "NCDHW"),
    )
    return out + bias.reshape(1, Cout, 1, 1, 1)


if __name__ == "__main__":
    key = jax.random.PRNGKey(0)
    fwd = jax.jit(downsample_forward)

    # config 1: dims=4 -> dim=8 (matches DownSample(4, 8)), even spatial
    # config 2: dims=5 -> dim=12, odd spatial (exercises K / Cout / M padding paths)
    configs = [
        (2, 4, 8, 8),    # (N, Cin, Cout, spatial)
        (1, 5, 12, 7),
    ]
    for N, Cin, Cout, S in configs:
        key, kx, kw, kb = jax.random.split(key, 4)
        x = jax.random.normal(kx, (N, Cin, S, S, S), dtype=jnp.float32)
        fan_in = Cin * 27
        bound = 1.0 / (fan_in ** 0.5)
        weight = jax.random.uniform(kw, (Cout, Cin, 3, 3, 3), jnp.float32, -bound, bound)
        bias = jax.random.uniform(kb, (Cout,), jnp.float32, -bound, bound)

        out = jax.block_until_ready(fwd(x, weight, bias))
        ref = jax.block_until_ready(_reference(x, weight, bias))

        So = (S - 1) // 2 + 1
        assert out.shape == (N, Cout, So, So, So), out.shape
        # bf16-streamed operands / f32 MXU accumulation -> loosened tolerance
        assert jnp.allclose(out, ref, atol=3e-2, rtol=3e-2), \
            float(jnp.max(jnp.abs(out - ref)))

    print("KERNEL_OK")
</pallas_src>

<mosaic_0001>
module attributes {stable_mosaic.version = 11 : i64} {
  func.func @_conv_gemm_kernel(%arg0: i32, %arg1: i32, %arg2: memref<1x112x128xbf16, #tpu.memory_space<vmem>>, %arg3: memref<8x112xbf16, #tpu.memory_space<vmem>>, %arg4: memref<8x1xf32, #tpu.memory_space<vmem>>, %arg5: memref<1x8x128xf32, #tpu.memory_space<vmem>>) attributes {dimension_semantics = [#tpu.dimension_semantics<parallel>, #tpu.dimension_semantics<parallel>], iteration_bounds = array<i64: 2, 1>, scalar_prefetch = 0 : i64, scratch_operands = 0 : i64, tpu.core_type = #tpu.core_type<tc>, window_params = [{transform_indices = @transform_0, window_bounds = array<i64: 1, 112, 128>}, {pipeline_mode = #tpu.pipeline_mode<synchronous>, transform_indices = @transform_1, window_bounds = array<i64: 8, 112>}, {pipeline_mode = #tpu.pipeline_mode<synchronous>, transform_indices = @transform_2, window_bounds = array<i64: 8, 1>}, {transform_indices = @transform_3, window_bounds = array<i64: 1, 8, 128>}]} {
    %c0 = arith.constant 0 : index
    %c0_0 = arith.constant 0 : index
    %0 = vector.load %arg3[%c0, %c0_0] : memref<8x112xbf16, #tpu.memory_space<vmem>>, vector<8x112xbf16>
    %c0_1 = arith.constant 0 : index
    %c0_2 = arith.constant 0 : index
    %c0_3 = arith.constant 0 : index
    %1 = vector.load %arg2[%c0_1, %c0_2, %c0_3] : memref<1x112x128xbf16, #tpu.memory_space<vmem>>, vector<1x112x128xbf16>
    %2 = vector.shape_cast %1 : vector<1x112x128xbf16> to vector<112x128xbf16>
    %cst = arith.constant dense<0.000000e+00> : vector<8x128xf32>
    %3 = tpu.matmul %0, %2, %cst {dimension_numbers = #tpu.dot_dimension_numbers<[1], [0], [0], [1], [0, 0, 1, 1], [], []>} : vector<8x112xbf16>, vector<112x128xbf16>, vector<8x128xf32> -> vector<8x128xf32>
    %c0_4 = arith.constant 0 : index
    %c0_5 = arith.constant 0 : index
    %4 = vector.load %arg4[%c0_4, %c0_5] : memref<8x1xf32, #tpu.memory_space<vmem>>, vector<8x1xf32>
    %5 = vector.broadcast %4 : vector<8x1xf32> to vector<8x128xf32>
    %6 = arith.addf %3, %5 : vector<8x128xf32>
    %c0_6 = arith.constant 0 : index
    %c0_7 = arith.constant 0 : index
    %c0_8 = arith.constant 0 : index
    %7 = vector.load %arg5[%c0_6, %c0_7, %c0_8] : memref<1x8x128xf32, #tpu.memory_space<vmem>>, vector<1x8x128xf32>
    %8 = vector.shape_cast %7 : vector<1x8x128xf32> to vector<8x128xf32>
    %9 = vector.shape_cast %6 : vector<8x128xf32> to vector<1x8x128xf32>
    tpu.vector_store %arg5[%c0_6, %c0_7, %c0_8], %9 {strides = array<i32>} : memref<1x8x128xf32, #tpu.memory_space<vmem>>, vector<1x8x128xf32>,
    return
  }
  func.func @transform_0(%arg0: i32, %arg1: i32) -> (i32, i32, i32) {
    %c0_i32 = arith.constant 0 : i32
    %c0_i32_0 = arith.constant 0 : i32
    return %arg0, %c0_i32, %arg1 : i32, i32, i32
  }
  func.func @transform_1(%arg0: i32, %arg1: i32) -> (i32, i32) {
    %c0_i32 = arith.constant 0 : i32
    %c0_i32_0 = arith.constant 0 : i32
    %c0_i32_1 = arith.constant 0 : i32
    return %c0_i32, %c0_i32_0 : i32, i32
  }
  func.func @transform_2(%arg0: i32, %arg1: i32) -> (i32, i32) {
    %c0_i32 = arith.constant 0 : i32
    %c0_i32_0 = arith.constant 0 : i32
    %c0_i32_1 = arith.constant 0 : i32
    return %c0_i32, %c0_i32_0 : i32, i32
  }
  func.func @transform_3(%arg0: i32, %arg1: i32) -> (i32, i32, i32) {
    %c0_i32 = arith.constant 0 : i32
    %c0_i32_0 = arith.constant 0 : i32
    return %arg0, %c0_i32, %arg1 : i32, i32, i32
  }
}

</mosaic_0001>

<llo_original>
// kernel: downsample_forward.1
$region0: #{downsample_forward.1}
  #allocation0 [shape = 'u32[]', space=smem, size = 0x4, offset = 0x4, fixed_abs, tag = 'smem constant byte address 0x4 - core index']
  #allocation1 [shape = 'u32[144,128]{1,0:T(1,128)}', space=vmem, size = 0x12000, scoped, tag = 'internal scratch']
  %s0 = inlined_call_operand.vmem [shape: bf16[2,112,128], index: 0, kind: input, shape index: {}]
  %s1 = inlined_call_operand.vmem [shape: bf16[8,112], index: 1, kind: input, shape index: {}]
  %s2 = inlined_call_operand.vmem [shape: f32[8,1], index: 2, kind: input, shape index: {}]
  %s3 = inlined_call_operand.vmem [shape: f32[2,8,128], index: 3, kind: output, shape index: {}]
  %s4 = sld [smem:[#allocation0]]
  $region45: #{downsample_forward.1} parent=0
    _
  %s6 = ssub.s32 1, %s4
  %s7 = scalar_select 0, %s6, %s4
  loop: start=0, step=1, limit=4
  $region2: #{downsample_forward.1} parent=0 // loop_pre_header
    _
  $region3: #{downsample_forward.1} parent=0 // loop_header
    %s9 = sphi 0, %s13
    %p10 = scmp.ge.s32.totalorder %s9, 4
    %s16 = sphi 0, %s28
    %s17 = sphi 0, %s24
    %s18 = sphi 0, %s16
    %s19 = sphi 0, %s17
    %s20 = sphi 0, %s18
    %s21 = sphi 0, %s19
    %s33 = sphi 0, %s35
    %s36 = sphi 0, %s33
    %s37 = sphi 0, %s36
    %s53 = sphi 0, %s37
    %s57 = sphi 0, %s57
    %s59 = sphi 0, %s57
    %s60 = sphi 0, %s59
    %s74 = sphi 0, %s60
    %s78 = sphi 0, %s78
    %s80 = sphi 0, %s78
    %s81 = sphi 0, %s80
    %s95 = sphi 0, %s81
    %s103 = sphi 0, %s105
    %s106 = sphi 0, %s103
    %s107 = sphi 0, %s106
    %s123 = sphi 0, %s107
  $region4: #{downsample_forward.1} parent=0 // loop_header_branch
    %12 = sbr.rel (%p10) target = $region8
  $region5: #{downsample_forward.1} parent=0 // loop_body
    %s14 = ssub.s32 %s9, 1
    %s15 = ssub.s32 %s9, 2
    %s22 = sadd.s32 1, %s17
    %p23 = scmp.ge.s32.totalorder %s22, 1
    %s24 = scalar_select %p23, 0, %s22
    %s25 = sadd.s32 1, %s16
    %s26 = scalar_select %p23, %s25, %s16
    %p27 = scmp.ge.s32.totalorder %s26, 2
    %s28 = scalar_select %p27, 0, %s26
    %s29 = ssub.s32 %s16, %s28
    %s30 = ssub.s32 %s17, %s24
    %s31 = sor.u32 %s29, %s30
    %p32 = scmp.eq.s32.totalorder %s31, 0
    %s34 = sadd.s32 %s33, 1
    %s35 = scalar_select %p32, %s33, %s34
    %p38 = pneg %p32
    %p39 = scmp.eq.s32.totalorder %s9, 1
    %p40 = por %p38, %p39
    %p41 = scmp.ne.s32.totalorder %s33, %s36
    %p42 = scmp.eq.s32.totalorder %s9, 0
    %p43 = por %p41, %p42
    %p44 = scmp.ne.s32.totalorder %s33, %s36
    %p45 = scmp.eq.s32.totalorder %s14, 1
    %p46 = por %p44, %p45
    %p47 = scmp.ne.s32.totalorder %s36, %s37
    %p48 = scmp.eq.s32.totalorder %s14, 0
    %p49 = por %p47, %p48
    %p50 = scmp.ne.s32.totalorder %s36, %s37
    %p51 = scmp.eq.s32.totalorder %s15, 1
    %p52 = por %p50, %p51
    %p54 = scmp.ne.s32.totalorder %s37, %s53
    %p55 = scmp.eq.s32.totalorder %s15, 0
    %p56 = por %p54, %p55
    %s58 = sadd.s32 %s57, 1
    %p61 = scmp.eq.s32.totalorder %s9, 1
    %p62 = scmp.ne.s32.totalorder %s57, %s59
    %p63 = scmp.eq.s32.totalorder %s9, 0
    %p64 = por %p62, %p63
    %p65 = scmp.ne.s32.totalorder %s57, %s59
    %p66 = scmp.eq.s32.totalorder %s14, 1
    %p67 = por %p65, %p66
    %p68 = scmp.ne.s32.totalorder %s59, %s60
    %p69 = scmp.eq.s32.totalorder %s14, 0
    %p70 = por %p68, %p69
    %p71 = scmp.ne.s32.totalorder %s59, %s60
    %p72 = scmp.eq.s32.totalorder %s15, 1
    %p73 = por %p71, %p72
    %p75 = scmp.ne.s32.totalorder %s60, %s74
    %p76 = scmp.eq.s32.totalorder %s15, 0
    %p77 = por %p75, %p76
    %s79 = sadd.s32 %s78, 1
    %p82 = scmp.eq.s32.totalorder %s9, 1
    %p83 = scmp.ne.s32.totalorder %s78, %s80
    %p84 = scmp.eq.s32.totalorder %s9, 0
    %p85 = por %p83, %p84
    %p86 = scmp.ne.s32.totalorder %s78, %s80
    %p87 = scmp.eq.s32.totalorder %s14, 1
    %p88 = por %p86, %p87
    %p89 = scmp.ne.s32.totalorder %s80, %s81
    %p90 = scmp.eq.s32.totalorder %s14, 0
    %p91 = por %p89, %p90
    %p92 = scmp.ne.s32.totalorder %s80, %s81
    %p93 = scmp.eq.s32.totalorder %s15, 1
    %p94 = por %p92, %p93
    %p96 = scmp.ne.s32.totalorder %s81, %s95
    %p97 = scmp.eq.s32.totalorder %s15, 0
    %p98 = por %p96, %p97
    %s99 = ssub.s32 %s16, %s28
    %s100 = ssub.s32 %s17, %s24
    %s101 = sor.u32 %s99, %s100
    %p102 = scmp.eq.s32.totalorder %s101, 0
    %s104 = sadd.s32 %s103, 1
    %s105 = scalar_select %p102, %s103, %s104
    %p108 = pneg %p102
    %p109 = scmp.eq.s32.totalorder %s9, 1
    %p110 = por %p108, %p109
    %p111 = scmp.ne.s32.totalorder %s103, %s106
    %p112 = scmp.eq.s32.totalorder %s9, 0
    %p113 = por %p111, %p112
    %p114 = scmp.ne.s32.totalorder %s103, %s106
    %p115 = scmp.eq.s32.totalorder %s14, 1
    %p116 = por %p114, %p115
    %p117 = scmp.ne.s32.totalorder %s106, %s107
    %p118 = scmp.eq.s32.totalorder %s14, 0
    %p119 = por %p117, %p118
    %p120 = scmp.ne.s32.totalorder %s106, %s107
    %p121 = scmp.eq.s32.totalorder %s15, 1
    %p122 = por %p120, %p121
    %p124 = scmp.ne.s32.totalorder %s107, %s123
    %p125 = scmp.eq.s32.totalorder %s15, 0
    %p126 = por %p124, %p125
    %p127 = scmp.le.s32.totalorder 1, %s9
    %p128 = scmp.lt.s32.totalorder %s9, 3
    %p129 = pnand %p127, %p128
    %p130 = pneg %p129
    // Predicated region
    $region9: #{downsample_forward.1} parent=5 // pred_check
      _
    $region10: #{downsample_forward.1} parent=5 // pred_check_branch
      %132 = sbr.rel (%p129) target = $region12
    $region11: #{downsample_forward.1} parent=5 // pred_region
      %s133 = ssub.s32 %s9, 1
      // Predicated region
      $region13: #{downsample_forward.1} parent=11 // pred_check
        %p134 = pneg %p70
      $region14: #{downsample_forward.1} parent=11 // pred_check_branch
        %136 = sbr.rel (%p134) target = $region16
      $region15: #{downsample_forward.1} parent=11 // pred_region
        _
      $region16: #{downsample_forward.1} parent=11 // pred_fallthru
        _
      // Predicated region
      $region17: #{downsample_forward.1} parent=11 // pred_check
        %p137 = pneg %p91
      $region18: #{downsample_forward.1} parent=11 // pred_check_branch
        %139 = sbr.rel (%p137) target = $region20
      $region19: #{downsample_forward.1} parent=11 // pred_region
        _
      $region20: #{downsample_forward.1} parent=11 // pred_fallthru
        _
    $region12: #{downsample_forward.1} parent=5 // pred_fallthru
      _
    %p140 = scmp.lt.s32.totalorder %s9, 2
    // Predicated region
    $region21: #{downsample_forward.1} parent=5 // pred_check
      %p141 = pneg %p140
    $region22: #{downsample_forward.1} parent=5 // pred_check_branch
      %143 = sbr.rel (%p141) target = $region24
    $region23: #{downsample_forward.1} parent=5 // pred_region
      // Predicated region
      $region25: #{downsample_forward.1} parent=23 // pred_check
        %p144 = pneg %p43
      $region26: #{downsample_forward.1} parent=23 // pred_check_branch
        %146 = sbr.rel (%p144) target = $region28
      $region27: #{downsample_forward.1} parent=23 // pred_region
        %p147 = scmp.lt.s32.totalorder %s16, 1
        %s148 = scalar_select %p147, %s16, 1
        %p149 = scmp.lt.s32.totalorder %s17, 0
        %s150 = scalar_select %p149, %s17, 0
        %s151 = smul.addr %s148, 14
        %s152 = sadd.s32 %s150, %s151
        %s153 = smul.addr %s152, 4
        %s154 = scalar_lea.vmem %s0, %s153
      $region28: #{downsample_forward.1} parent=23 // pred_fallthru
        _
    $region24: #{downsample_forward.1} parent=5 // pred_fallthru
      _
    %p155 = scmp.le.s32.totalorder 1, %s9
    %p156 = scmp.lt.s32.totalorder %s9, 3
    %p157 = pnand %p155, %p156
    %p158 = pneg %p157
    // Predicated region
    $region29: #{downsample_forward.1} parent=5 // pred_check
      _
    $region30: #{downsample_forward.1} parent=5 // pred_check_branch
      %160 = sbr.rel (%p157) target = $region32
    $region31: #{downsample_forward.1} parent=5 // pred_region
      %s161 = ssub.s32 %s9, 1
      %p162 = scmp.lt.s32.totalorder %s18, 1
      %s163 = scalar_select %p162, %s18, 1
      %p164 = scmp.lt.s32.totalorder %s19, 0
      %s165 = scalar_select %p164, %s19, 0
      %s166 = smul.addr %s163, 14
      %s167 = sadd.s32 %s165, %s166
      %s168 = smul.addr %s167, 4
      %s169 = scalar_lea.vmem %s0, %s168
      %p170 = pneg %p49
      %p171 = pneg %p46
      %p172 = pneg %p70
      %p173 = pneg %p67
      %p174 = pneg %p91
      %p175 = pneg %p88
      %p176 = pneg %p119
      %p177 = pneg %p116
      %p178 = scmp.lt.s32.totalorder %s18, 1
      %s179 = scalar_select %p178, %s18, 1
      %p180 = scmp.lt.s32.totalorder %s19, 0
      %s181 = scalar_select %p180, %s19, 0
      %s182 = sadd.s32 %s181, %s179
      %s183 = smul.addr %s182, 8
      %s184 = scalar_lea.vmem %s3, %s183
      %p185 = scmp.lt.s32.totalorder %s18, 1
      %s186 = scalar_select %p185, %s18, 1
      %p187 = scmp.lt.s32.totalorder %s19, 0
      %s188 = scalar_select %p187, %s19, 0
      %s189 = smul.addr %s186, 14
      %s190 = sadd.s32 %s188, %s189
      %s191 = smul.addr %s190, 4
      %s192 = scalar_lea.vmem %s0, %s191
      %p193 = scmp.lt.s32.totalorder %s18, 1
      %s194 = scalar_select %p193, %s18, 1
      %p195 = scmp.lt.s32.totalorder %s19, 0
      %s196 = scalar_select %p195, %s19, 0
      %s197 = sadd.s32 %s196, %s194
      %s198 = smul.addr %s197, 8
      %s199 = scalar_lea.vmem %s3, %s198
      %v201 = vld [vmem:[%s1] sm:$0xf]
      %v202 = vld [vmem:[%s192] sm:$0xf]
      %v203 = vld [vmem:[%s192 + $0x4] sm:$0xf]
      %v204 = vld [vmem:[%s192 + $0x8] sm:$0xf]
      %v205 = vld [vmem:[%s192 + $0xc] sm:$0xf]
      %v206 = vld [vmem:[%s192 + $0x10] sm:$0xf]
      %v207 = vld [vmem:[%s192 + $0x14] sm:$0xf]
      %v208 = vld [vmem:[%s192 + $0x18] sm:$0xf]
      %v209 = vld [vmem:[%s192 + $0x1c] sm:$0xf]
      %v210 = vld [vmem:[%s192 + $0x20] sm:$0xf]
      %v211 = vld [vmem:[%s192 + $0x24] sm:$0xf]
      %v212 = vld [vmem:[%s192 + $0x28] sm:$0xf]
      %v213 = vld [vmem:[%s192 + $0x2c] sm:$0xf]
      %v214 = vld [vmem:[%s192 + $0x30] sm:$0xf]
      %v215 = vld [vmem:[%s192 + $0x34] sm:$0xf]
      %v216 = vld [vmem:[%s2] sm:$0xff]
      %218 = vset.pattern.permute.xlu0 0
      %219 = vperm.xlu0 %218, %v216
      %v220 = vpop.permute.xlu0 %219
      %v236 = vunpack.c.l.b16 %v202
      %v237 = vunpack.c.l.b16 %v203
      %v238 = vunpack.c.l.b16 %v204
      %v239 = vunpack.c.l.b16 %v205
      %v240 = vunpack.c.l.b16 %v206
      %v241 = vunpack.c.l.b16 %v207
      %v242 = vunpack.c.l.b16 %v208
      %v243 = vunpack.c.l.b16 %v209
      %v244 = vunpack.c.l.b16 %v210
      %v245 = vunpack.c.l.b16 %v211
      %v246 = vunpack.c.l.b16 %v212
      %v247 = vunpack.c.l.b16 %v213
      %v248 = vunpack.c.l.b16 %v214
      %v249 = vunpack.c.l.b16 %v215
      %v250 = vpack.c.b16 %v237, %v236
      %v251 = vpack.c.b16 %v239, %v238
      %v252 = vpack.c.b16 %v241, %v240
      %v253 = vpack.c.b16 %v243, %v242
      %v254 = vpack.c.b16 %v245, %v244
      %v255 = vpack.c.b16 %v247, %v246
      %v256 = vpack.c.b16 %v249, %v248
      %vm264 = vcmask 916480
      %v266 = vsel %vm264, %v201, 0
      %268 = vmatprep.subr.bf16.mxu0 0
      %269 = vmatpush1.bf16.msra.mxu0 %v250
      %270 = vmatprep.subr.bf16.mxu0 0
      %271 = vmatpush1.bf16.msra.mxu0 %v251
      %272 = vmatprep.subr.bf16.mxu0 0
      %273 = vmatpush1.bf16.msra.mxu0 %v252
      %274 = vmatprep.subr.bf16.mxu0 0
      %275 = vmatpush1.bf16.msra.mxu0 %v253
      %276 = vmatprep.subr.bf16.mxu0 0
      %277 = vmatpush1.bf16.msra.mxu0 %v254
      %278 = vmatprep.subr.bf16.mxu0 0
      %279 = vmatpush1.bf16.msra.mxu0 %v255
      %280 = vmatprep.subr.bf16.mxu0 0
      %281 = vmatpush1.bf16.msra.mxu0 %v256
      %282 = vmatprep.subr.bf16.mxu0 0
      %283 = vmatpush1.bf16.msra.mxu0 0
      %284 = vmatprep.subr.bf16.mxu0 0
      %285 = vmatpush1.bf16.msra.mxu0 0
      %286 = vmatprep.subr.bf16.mxu0 0
      %287 = vmatpush1.bf16.msra.mxu0 0
      %288 = vmatprep.subr.bf16.mxu0 0
      %289 = vmatpush1.bf16.msra.mxu0 0
      %290 = vmatprep.subr.bf16.mxu0 0
      %291 = vmatpush1.bf16.msra.mxu0 0
      %292 = vmatprep.subr.bf16.mxu0 0
      %293 = vmatpush1.bf16.msra.mxu0 0
      %294 = vmatprep.subr.bf16.mxu0 0
      %295 = vmatpush1.bf16.msra.mxu0 0
      %296 = vmatprep.subr.bf16.mxu0 0
      %297 = vmatpush1.bf16.msra.mxu0 0
      %298 = vmatprep.subr.bf16.mxu0 0
      %299 = vmatpush1.bf16.msra.mxu0 0
      %300 = vmatprep.mubr.bf16.mxu0 0
      %301 = vmatmul.mubr.bf16.gmra.mrb[0].mxu0 %v266
      %v302 = vpop.f32.mrb[0].mxu0
      %v303 = vadd.f32 %v220, %v302
      %v304 = vpop.f32.mrb[0].mxu0
      %v305 = vpop.f32.mrb[0].mxu0
      %v306 = vpop.f32.mrb[0].mxu0
      %307 = vdwg.mxu0
      %308 = vst [vmem:[%s199] sm:$0xff] %v303
      %p309 = scmp.lt.s32.totalorder %s18, 1
      %s310 = scalar_select %p309, %s18, 1
      %p311 = scmp.lt.s32.totalorder %s19, 0
      %s312 = scalar_select %p311, %s19, 0
      %s313 = sadd.s32 %s312, %s310
      %s314 = smul.addr %s313, 8
      %s315 = scalar_lea.vmem %s3, %s314
      // Predicated region
      $region33: #{downsample_forward.1} parent=31 // pred_check
        %p316 = pneg %p116
      $region34: #{downsample_forward.1} parent=31 // pred_check_branch
        %318 = sbr.rel (%p316) target = $region36
      $region35: #{downsample_forward.1} parent=31 // pred_region
        _
      $region36: #{downsample_forward.1} parent=31 // pred_fallthru
        _
    $region32: #{downsample_forward.1} parent=5 // pred_fallthru
      _
    %p319 = scmp.le.s32.totalorder 2, %s9
    // Predicated region
    $region37: #{downsample_forward.1} parent=5 // pred_check
      %p320 = pneg %p319
    $region38: #{downsample_forward.1} parent=5 // pred_check_branch
      %322 = sbr.rel (%p320) target = $region40
    $region39: #{downsample_forward.1} parent=5 // pred_region
      %s323 = ssub.s32 %s9, 2
      // Predicated region
      $region41: #{downsample_forward.1} parent=39 // pred_check
        %p324 = pneg %p122
      $region42: #{downsample_forward.1} parent=39 // pred_check_branch
        %326 = sbr.rel (%p324) target = $region44
      $region43: #{downsample_forward.1} parent=39 // pred_region
        %p327 = scmp.lt.s32.totalorder %s20, 1
        %s328 = scalar_select %p327, %s20, 1
        %p329 = scmp.lt.s32.totalorder %s21, 0
        %s330 = scalar_select %p329, %s21, 0
        %s331 = sadd.s32 %s330, %s328
        %s332 = smul.addr %s331, 8
        %s333 = scalar_lea.vmem %s3, %s332
      $region44: #{downsample_forward.1} parent=39 // pred_fallthru
        _
    $region40: #{downsample_forward.1} parent=5 // pred_fallthru
      _
  $region6: #{downsample_forward.1} parent=0 // loop_footer
    %s13 = sadd.s32 1, %s9
  $region7: #{downsample_forward.1} parent=0 // loop_footer_branch
    %8 = sbr.rel target = $region3
  $region8: #{downsample_forward.1} parent=0 // loop_exit
    _

</llo_original>
